<compile_context>
chip_gen: v5e
topology: v5e:2x2
jax: 0.10.0
libtpu: 0.0.40
codegen_flags: <defaults>
</compile_context>

<pallas_src>
import jax
import jax.numpy as jnp
from jax.experimental import pallas as pl
from jax.experimental.pallas import tpu as pltpu


def _round_up(n, m):
    return ((n + m - 1) // m) * m


def net_kernel(x_ref, w_ref, o_ref):
    # torch.matmul(w[(2L,1)], x[(1,)]).view(2, L) == (w viewed as (2, L)) * x
    # SMEM scalar broadcast -> single VPU vmul over a lane-dense (2, Lp) tile.
    x_scalar = x_ref[0, 0]
    o_ref[...] = w_ref[...] * x_scalar


def net_forward(w, x, num_labels):
    """w: torch-layout (2*num_labels, 1) f32 parameter (any reshapeable layout),
    x: scalar-like (shape (1,) or ()).

    Returns (2, num_labels) f32, matching Net.forward exactly.
    """
    two_l = num_labels * 2
    lanes = _round_up(max(num_labels, 1), 128)  # lane-dense, unmasked stores

    x2d = jnp.asarray(x, jnp.float32).reshape(1, 1)

    # Row-major view (2L,1) -> (2, L): identical element order to torch .view(2, L).
    w2d = jnp.asarray(w, jnp.float32).reshape(two_l).reshape(2, num_labels)
    # Pad label dim up to a multiple of 128 so the kernel block is full-lane-width.
    w_padded = jnp.pad(w2d, ((0, 0), (0, lanes - num_labels)))

    out_padded = pl.pallas_call(
        net_kernel,
        out_shape=jax.ShapeDtypeStruct((2, lanes), jnp.float32),
        in_specs=[
            pl.BlockSpec(memory_space=pltpu.MemorySpace.SMEM),  # x scalar
            pl.BlockSpec(memory_space=pltpu.MemorySpace.VMEM),  # w (2, Lp)
        ],
        out_specs=pl.BlockSpec(memory_space=pltpu.MemorySpace.VMEM),
    )(x2d, w_padded)

    # Drop the lane padding; layout is already the final row-major (2, L).
    return out_padded[:, :num_labels]


if __name__ == "__main__":
    num_labels = 8

    key = jax.random.PRNGKey(0)
    k_w, k_x = jax.random.split(key)

    # torch.rand(num_labels * 2, 1) equivalent: uniform [0, 1)
    w = jax.random.uniform(k_w, (num_labels * 2, 1), dtype=jnp.float32)
    # the module multiplies w by a single scalar input
    x = jax.random.uniform(k_x, (1,), dtype=jnp.float32)

    out = net_forward(w, x, num_labels)
    out = jax.block_until_ready(out)

    # reference (pure JAX) check of the exact PyTorch semantics
    ref = (w.reshape(-1) * x[0]).reshape(2, num_labels)
    assert out.shape == (2, num_labels)
    assert jnp.allclose(out, ref, rtol=1e-6, atol=1e-6)

    print("KERNEL_OK")
</pallas_src>

<mosaic_0001>
module attributes {stable_mosaic.version = 11 : i64} {
  func.func @net_kernel(%arg0: memref<1x1xf32, #tpu.memory_space<smem>>, %arg1: memref<2x128xf32, #tpu.memory_space<vmem>>, %arg2: memref<2x128xf32, #tpu.memory_space<vmem>>) attributes {dimension_semantics = [], scalar_prefetch = 0 : i64, scratch_operands = 0 : i64, tpu.core_type = #tpu.core_type<tc>} {
    %c0 = arith.constant 0 : index
    %c0_0 = arith.constant 0 : index
    %0 = memref.load %arg0[%c0, %c0_0] : memref<1x1xf32, #tpu.memory_space<smem>>
    %c0_1 = arith.constant 0 : index
    %c0_2 = arith.constant 0 : index
    %1 = vector.load %arg1[%c0_1, %c0_2] : memref<2x128xf32, #tpu.memory_space<vmem>>, vector<2x128xf32>
    %2 = vector.broadcast %0 : f32 to vector<2x128xf32>
    %3 = arith.mulf %1, %2 : vector<2x128xf32>
    %c0_3 = arith.constant 0 : index
    %c0_4 = arith.constant 0 : index
    %4 = vector.load %arg2[%c0_3, %c0_4] : memref<2x128xf32, #tpu.memory_space<vmem>>, vector<2x128xf32>
    tpu.vector_store %arg2[%c0_3, %c0_4], %3 {strides = array<i32>} : memref<2x128xf32, #tpu.memory_space<vmem>>, vector<2x128xf32>,
    return
  }
}

</mosaic_0001>

<llo_original>
// kernel: tpu_custom_call.1
$region0: #{tpu_custom_call.1}
  #allocation0 [shape = 'u32[]', space=smem, size = 0x4, offset = 0x4, fixed_abs, tag = 'smem constant byte address 0x4 - core index']
  #allocation1 [shape = 'u32[72,128]{1,0:T(1,128)}', space=vmem, size = 0x9000, scoped, tag = 'internal scratch']
  #allocation2 [shape = 'f32[1,1]{1,0:T(1,128)S(6)}', space=smem, size = 0x200, scoped, tag = 'scoped memory for tpu_custom_call.1']
  %s0 = inlined_call_operand.<no memory space> [shape: f32[1,1], index: 0, kind: input, shape index: {}]
  %s1 = inlined_call_operand.vmem [shape: f32[2,128], index: 1, kind: input, shape index: {}]
  %s2 = inlined_call_operand.hbm [shape: f32[2,128], index: 2, kind: output, shape index: {}]
  %s3 = sld [smem:[#allocation0]]
  $region18: #{tpu_custom_call.1} parent=0
    _
  %s5 = ssub.s32 1, %s3
  %s6 = scalar_select 0, %s5, %s3
  %7 = sst [smem:[#allocation2]] %s0
  $region1: #{tpu_custom_call.1} parent=0
    #allocation3 [shape = 'u8[1024]{0}', space=vmem, size = 0x400, scoped, tag = 'output window, operand 0, single buffered']
    #allocation4 [shape = 's32[1]{0}', space=sflag, size = 0x4, scoped, tag = 'scoped memory for tpu_custom_call.1']
    %8 = vsyncpa [#allocation4], 0
    // Predicated region
    $region2: #{tpu_custom_call.1} parent=1 // pred_check
      _
    $region3: #{tpu_custom_call.1} parent=1 // pred_check_branch
      %10 = sbr.rel (0) target = $region5
    $region4: #{tpu_custom_call.1} parent=1 // pred_region
      _
    $region5: #{tpu_custom_call.1} parent=1 // pred_fallthru
      _
    // Predicated region
    $region6: #{tpu_custom_call.1} parent=1 // pred_check
      _
    $region7: #{tpu_custom_call.1} parent=1 // pred_check_branch
      %12 = sbr.rel (0) target = $region9
    $region8: #{tpu_custom_call.1} parent=1 // pred_region
      _
    $region9: #{tpu_custom_call.1} parent=1 // pred_fallthru
      _
    %s13 = sld [smem:[#allocation2]]
    %v14 = vld [vmem:[%s1] sm:$0x3]
    %v15 = vstv %s13
    %v16 = vmul.f32 %v14, %v15
    %17 = vst [vmem:[#allocation3] sm:$0x3] %v16
    // Predicated region
    $region10: #{tpu_custom_call.1} parent=1 // pred_check
      _
    $region11: #{tpu_custom_call.1} parent=1 // pred_check_branch
      %19 = sbr.rel (0) target = $region13
    $region12: #{tpu_custom_call.1} parent=1 // pred_region
      %21 = vsyncadd [#allocation4], 0
      %s23 = sshll.u32 [#allocation3], 4
      %s24 = int_to_ptr.vmem [resolvable:$true] %s23
      %s25 = sshll.u32 %s2, 4
      %s26 = int_to_ptr.hbm [resolvable:$true] %s25
      %28 = dma.vmem_to_hbm [thread:$0]  %s24, 32, %s26, [#allocation4]
    $region13: #{tpu_custom_call.1} parent=1 // pred_fallthru
      _
    // Predicated region
    $region14: #{tpu_custom_call.1} parent=1 // pred_check
      _
    $region15: #{tpu_custom_call.1} parent=1 // pred_check_branch
      %30 = sbr.rel (0) target = $region17
    $region16: #{tpu_custom_call.1} parent=1 // pred_region
      %32 = dma.done [#allocation4], 32
    $region17: #{tpu_custom_call.1} parent=1 // pred_fallthru
      _
    %33 = vsyncpa [#allocation4], 1

</llo_original>
